<compile_context>
chip_gen: v7x
topology: tpu7x:2x2x1
jax: 0.10.0
libtpu: 0.0.40
codegen_flags: <defaults>
</compile_context>

<pallas_src>
import math

import jax
import jax.numpy as jnp
from jax.experimental import pallas as pl
from jax.experimental.pallas import tpu as pltpu  # noqa: F401  (TPU backend)

# Fused / padded problem sizes.
N_IN = 168    # 1*8*3*7 flattened input elements
N_OUT = 160   # 8*4*5  flattened output elements
K_PAD = 256   # padded contraction dim: 168 inputs + 1 bias lane + zero pad
N_PAD = 256   # padded (lane-dense) output dim: 160 outputs + zero pad


# ----------------------------------------------------------------------------
# Parameters (PyTorch layout: weight (out, in), bias (out,))
# ----------------------------------------------------------------------------
def init_params(key):
    k1, k2, k3, k4 = jax.random.split(key, 4)
    lim1 = 1.0 / jnp.sqrt(6.0)   # linear1: Linear(6, 5)
    lim2 = 1.0 / jnp.sqrt(7.0)   # linear2: Linear(7, 8)
    return {
        "w1": jax.random.uniform(k1, (5, 6), jnp.float32, -lim1, lim1),
        "b1": jax.random.uniform(k2, (5,), jnp.float32, -lim1, lim1),
        "w2": jax.random.uniform(k3, (8, 7), jnp.float32, -lim2, lim2),
        "b2": jax.random.uniform(k4, (8,), jnp.float32, -lim2, lim2),
    }


# ----------------------------------------------------------------------------
# Pure-JAX reference of the (patched) module semantics.
# ----------------------------------------------------------------------------
def reference_forward(x, params):
    if x.shape[1] == 8:                       # trace-time branch, as in PyTorch
        x = jnp.transpose(x, (0, 2, 1, 3))
    z = x.reshape(-1, x.shape[-1]) @ params["w2"].T + params["b2"]   # (24, 8)
    z = z.reshape(8, 4, 3, 2)
    # TODO(synk): literal PyTorch raises here (linear1 expects last dim 6, got
    # 2); we merge the trailing (3, 2) dims into 6 in contiguous memory order.
    z = z.reshape(8 * 4, 6)
    y = z @ params["w1"].T + params["b1"]                            # (32, 5)
    return y.reshape(8, 4, 5)


# ----------------------------------------------------------------------------
# One-time precompute: collapse transpose -> linear2 -> reshape -> linear1
# into a single padded affine matrix (run once at init, NOT per forward).
#   rows [0, N_IN)  : composed weight (contribution of each flattened input)
#   row  N_IN       : composed bias   (paired with the constant-1.0 input lane)
#   remaining rows / cols: zeros (pure lane/sublane padding)
# ----------------------------------------------------------------------------
def precompute_fused_affine(params, x_shape):
    n_in = math.prod(x_shape)                 # 1*8*3*7 = 168
    assert n_in == N_IN

    def flat_fwd(x_flat):
        return reference_forward(x_flat.reshape(x_shape), params).reshape(-1)

    zeros = jnp.zeros((n_in,), jnp.float32)
    c = flat_fwd(zeros)                       # (160,)    composed bias
    at = jax.jacfwd(flat_fwd)(zeros).T        # (168,160) composed weight (exact W2*W1 products)

    a_pad = jnp.zeros((K_PAD, N_PAD), jnp.float32)
    a_pad = a_pad.at[:N_IN, :N_OUT].set(at.astype(jnp.float32))
    a_pad = a_pad.at[N_IN, :N_OUT].set(c.astype(jnp.float32))   # bias folded in
    return a_pad


# ----------------------------------------------------------------------------
# Fused Pallas kernel: y = x_aug @ A_pad  (single MXU matmul, bias folded,
# lane-dense 256-wide unmasked store).
# ----------------------------------------------------------------------------
def _fused_affine_kernel(x_ref, a_ref, y_ref):
    y_ref[...] = jnp.dot(x_ref[...], a_ref[...],
                         preferred_element_type=jnp.float32)


@jax.jit
def model_forward(x, a_pad):
    # Contiguous flatten (free), append constant-1.0 bias lane + zero padding.
    x_flat = x.reshape(1, N_IN).astype(jnp.float32)
    x_aug = jnp.zeros((1, K_PAD), jnp.float32)
    x_aug = x_aug.at[:, :N_IN].set(x_flat)
    x_aug = x_aug.at[:, N_IN].set(1.0)

    y_flat = pl.pallas_call(
        _fused_affine_kernel,
        out_shape=jax.ShapeDtypeStruct((1, N_PAD), jnp.float32),
        in_specs=[
            pl.BlockSpec((1, K_PAD), lambda: (0, 0)),
            pl.BlockSpec((K_PAD, N_PAD), lambda: (0, 0)),
        ],
        out_specs=pl.BlockSpec((1, N_PAD), lambda: (0, 0)),
    )(x_aug, a_pad)
    # Slice the 160 real output lanes and reshape (contiguous; free).
    return y_flat[:, :N_OUT].reshape(8, 4, 5)


if __name__ == "__main__":
    key = jax.random.PRNGKey(0)
    kx, kp = jax.random.split(key)

    # Shape chosen so the forward composes: shape[1] == 8 triggers the
    # transpose, last dim 7 feeds linear2, and 1*3*8*8 == 192 == 8*4*3*2.
    x = jax.random.normal(kx, (1, 8, 3, 7), dtype=jnp.float32)
    params = init_params(kp)

    # One-time (init-time) collapse of the whole linear chain into A_pad.
    a_pad = precompute_fused_affine(params, x.shape)
    a_pad = jax.block_until_ready(a_pad)

    y = model_forward(x, a_pad)
    y = jax.block_until_ready(y)

    # Check against the pure-JAX two-linear reference semantics.
    y_ref = reference_forward(x, params)
    assert y.shape == (8, 4, 5)
    assert jnp.allclose(y, y_ref, atol=1e-4, rtol=1e-4), float(
        jnp.max(jnp.abs(y - y_ref))
    )
    print("KERNEL_OK")
</pallas_src>

<mosaic_0001>
module attributes {stable_mosaic.version = 11 : i64} {
  func.func @_fused_affine_kernel(%arg0: memref<1x256xf32, #tpu.memory_space<vmem>>, %arg1: memref<256x256xf32, #tpu.memory_space<vmem>>, %arg2: memref<1x256xf32, #tpu.memory_space<vmem>>) attributes {dimension_semantics = [], scalar_prefetch = 0 : i64, scratch_operands = 0 : i64, tpu.core_type = #tpu.core_type<tc>} {
    %c0 = arith.constant 0 : index
    %c0_0 = arith.constant 0 : index
    %0 = vector.load %arg0[%c0, %c0_0] : memref<1x256xf32, #tpu.memory_space<vmem>>, vector<1x256xf32>
    %c0_1 = arith.constant 0 : index
    %c0_2 = arith.constant 0 : index
    %1 = vector.load %arg1[%c0_1, %c0_2] : memref<256x256xf32, #tpu.memory_space<vmem>>, vector<256x256xf32>
    %cst = arith.constant dense<0.000000e+00> : vector<1x256xf32>
    %2 = tpu.matmul %0, %1, %cst {dimension_numbers = #tpu.dot_dimension_numbers<[1], [0], [0], [1], [0, 0, 1, 1], [], []>} : vector<1x256xf32>, vector<256x256xf32>, vector<1x256xf32> -> vector<1x256xf32>
    %c0_3 = arith.constant 0 : index
    %c0_4 = arith.constant 0 : index
    %3 = vector.load %arg2[%c0_3, %c0_4] : memref<1x256xf32, #tpu.memory_space<vmem>>, vector<1x256xf32>
    tpu.vector_store %arg2[%c0_3, %c0_4], %2 {strides = array<i32>} : memref<1x256xf32, #tpu.memory_space<vmem>>, vector<1x256xf32>,
    return
  }
}

</mosaic_0001>

<llo_original>
// kernel: model_forward.1
$region0: #{model_forward.1}
  #allocation0 [shape = 'u32[]', space=smem, size = 0x4, offset = 0x4, fixed_abs, tag = 'smem constant byte address 0x4 - core index']
  #allocation1 [shape = 'u32[144,128]{1,0:T(1,128)}', space=vmem, size = 0x12000, scoped, tag = 'internal scratch']
  %s0 = inlined_call_operand.vmem [shape: f32[1,256], index: 0, kind: input, shape index: {}]
  %s1 = inlined_call_operand.hbm [shape: f32[256,256], index: 1, kind: input, shape index: {}]
  %s2 = inlined_call_operand.vmem [shape: f32[1,256], index: 2, kind: output, shape index: {}]
  %s3 = sld [smem:[#allocation0]]
  $region22: #{model_forward.1} parent=0
    _
  %s5 = ssub.s32 1, %s3
  %s6 = scalar_select 0, %s5, %s3
  $region1: #{model_forward.1} parent=0
    #allocation2 [shape = 'u8[262144]{0}', space=vmem, size = 0x40000, scoped, tag = 'input window, operand 1, single buffered']
    #allocation3 [shape = 's32[1]{0}', space=sflag, size = 0x4, scoped, tag = 'scoped memory for model_forward.1']
    %7 = vsyncpa [#allocation3], 0
    // Predicated region
    $region2: #{model_forward.1} parent=1 // pred_check
      _
    $region3: #{model_forward.1} parent=1 // pred_check_branch
      %9 = sbr.rel (0) target = $region5
    $region4: #{model_forward.1} parent=1 // pred_region
      _
    $region5: #{model_forward.1} parent=1 // pred_fallthru
      _
    // Predicated region
    $region6: #{model_forward.1} parent=1 // pred_check
      _
    $region7: #{model_forward.1} parent=1 // pred_check_branch
      %11 = sbr.rel (0) target = $region9
    $region8: #{model_forward.1} parent=1 // pred_region
      %s13 = ssub.s32 8192, 8192
      %14 = vsyncadd [#allocation3], %s13
      %s15 = sshll.u32 [#allocation2], 4
      %s16 = int_to_ptr.vmem [resolvable:$true] %s15
      %21 = dma.hbm_to_vmem [thread:$0]  %s1, 8192, %s16, [#allocation3], 256, 256, 16
    $region9: #{model_forward.1} parent=1 // pred_fallthru
      _
    // Predicated region
    $region10: #{model_forward.1} parent=1 // pred_check
      _
    $region11: #{model_forward.1} parent=1 // pred_check_branch
      %23 = sbr.rel (0) target = $region13
    $region12: #{model_forward.1} parent=1 // pred_region
      %24 = dma.done [#allocation3], 8192
    $region13: #{model_forward.1} parent=1 // pred_fallthru
      _
    %v25 = vld [vmem:[%s0] sm:$0x3]
    %v26 = vld [vmem:[#allocation2] sm:$0xff]
    %v27 = vld [vmem:[#allocation2 + $0x8] sm:$0xff]
    %v28 = vld [vmem:[#allocation2 + $0x10] sm:$0xff]
    %v29 = vld [vmem:[#allocation2 + $0x18] sm:$0xff]
    %v30 = vld [vmem:[#allocation2 + $0x20] sm:$0xff]
    %v31 = vld [vmem:[#allocation2 + $0x28] sm:$0xff]
    %v32 = vld [vmem:[#allocation2 + $0x30] sm:$0xff]
    %v33 = vld [vmem:[#allocation2 + $0x38] sm:$0xff]
    %v34 = vld [vmem:[#allocation2 + $0x40] sm:$0xff]
    %v35 = vld [vmem:[#allocation2 + $0x48] sm:$0xff]
    %v36 = vld [vmem:[#allocation2 + $0x50] sm:$0xff]
    %v37 = vld [vmem:[#allocation2 + $0x58] sm:$0xff]
    %v38 = vld [vmem:[#allocation2 + $0x60] sm:$0xff]
    %v39 = vld [vmem:[#allocation2 + $0x68] sm:$0xff]
    %v40 = vld [vmem:[#allocation2 + $0x70] sm:$0xff]
    %v41 = vld [vmem:[#allocation2 + $0x78] sm:$0xff]
    %v42 = vld [vmem:[#allocation2 + $0x80] sm:$0xff]
    %v43 = vld [vmem:[#allocation2 + $0x88] sm:$0xff]
    %v44 = vld [vmem:[#allocation2 + $0x90] sm:$0xff]
    %v45 = vld [vmem:[#allocation2 + $0x98] sm:$0xff]
    %v46 = vld [vmem:[#allocation2 + $0xa0] sm:$0xff]
    %v47 = vld [vmem:[#allocation2 + $0xa8] sm:$0xff]
    %v48 = vld [vmem:[#allocation2 + $0xb0] sm:$0xff]
    %v49 = vld [vmem:[#allocation2 + $0xb8] sm:$0xff]
    %v50 = vld [vmem:[#allocation2 + $0xc0] sm:$0xff]
    %v51 = vld [vmem:[#allocation2 + $0xc8] sm:$0xff]
    %v52 = vld [vmem:[#allocation2 + $0xd0] sm:$0xff]
    %v53 = vld [vmem:[#allocation2 + $0xd8] sm:$0xff]
    %v54 = vld [vmem:[#allocation2 + $0xe0] sm:$0xff]
    %v55 = vld [vmem:[#allocation2 + $0xe8] sm:$0xff]
    %v56 = vld [vmem:[#allocation2 + $0xf0] sm:$0xff]
    %v57 = vld [vmem:[#allocation2 + $0xf8] sm:$0xff]
    %v58 = vld [vmem:[#allocation2 + $0x100] sm:$0xff]
    %v59 = vld [vmem:[#allocation2 + $0x108] sm:$0xff]
    %v60 = vld [vmem:[#allocation2 + $0x110] sm:$0xff]
    %v61 = vld [vmem:[#allocation2 + $0x118] sm:$0xff]
    %v62 = vld [vmem:[#allocation2 + $0x120] sm:$0xff]
    %v63 = vld [vmem:[#allocation2 + $0x128] sm:$0xff]
    %v64 = vld [vmem:[#allocation2 + $0x130] sm:$0xff]
    %v65 = vld [vmem:[#allocation2 + $0x138] sm:$0xff]
    %v66 = vld [vmem:[#allocation2 + $0x140] sm:$0xff]
    %v67 = vld [vmem:[#allocation2 + $0x148] sm:$0xff]
    %v68 = vld [vmem:[#allocation2 + $0x150] sm:$0xff]
    %v69 = vld [vmem:[#allocation2 + $0x158] sm:$0xff]
    %v70 = vld [vmem:[#allocation2 + $0x160] sm:$0xff]
    %v71 = vld [vmem:[#allocation2 + $0x168] sm:$0xff]
    %v72 = vld [vmem:[#allocation2 + $0x170] sm:$0xff]
    %v73 = vld [vmem:[#allocation2 + $0x178] sm:$0xff]
    %v74 = vld [vmem:[#allocation2 + $0x180] sm:$0xff]
    %v75 = vld [vmem:[#allocation2 + $0x188] sm:$0xff]
    %v76 = vld [vmem:[#allocation2 + $0x190] sm:$0xff]
    %v77 = vld [vmem:[#allocation2 + $0x198] sm:$0xff]
    %v78 = vld [vmem:[#allocation2 + $0x1a0] sm:$0xff]
    %v79 = vld [vmem:[#allocation2 + $0x1a8] sm:$0xff]
    %v80 = vld [vmem:[#allocation2 + $0x1b0] sm:$0xff]
    %v81 = vld [vmem:[#allocation2 + $0x1b8] sm:$0xff]
    %v82 = vld [vmem:[#allocation2 + $0x1c0] sm:$0xff]
    %v83 = vld [vmem:[#allocation2 + $0x1c8] sm:$0xff]
    %v84 = vld [vmem:[#allocation2 + $0x1d0] sm:$0xff]
    %v85 = vld [vmem:[#allocation2 + $0x1d8] sm:$0xff]
    %v86 = vld [vmem:[#allocation2 + $0x1e0] sm:$0xff]
    %v87 = vld [vmem:[#allocation2 + $0x1e8] sm:$0xff]
    %v88 = vld [vmem:[#allocation2 + $0x1f0] sm:$0xff]
    %v89 = vld [vmem:[#allocation2 + $0x1f8] sm:$0xff]
    %v91 = vlaneseq
    %v92 = vshrl.u32 %v91, 7
    %v93 = vsub.s32 0, %v92
    %v94 = vrot.slane %v25, %v93
    %v95 = vlaneseq
    %v96 = vshrl.u32 %v95, 7
    %v97 = vsub.s32 1, %v96
    %v98 = vrot.slane %v25, %v97
    %101 = vmatprep.subr.mxu0 %v27
    %102 = vmatpush1.msra.mxu0 %v26
    %103 = vmatprep.subr.mxu0 %v29
    %104 = vmatpush1.msra.mxu0 %v28
    %105 = vmatprep.subr.mxu0 %v31
    %106 = vmatpush1.msra.mxu0 %v30
    %107 = vmatprep.subr.mxu0 %v33
    %108 = vmatpush1.msra.mxu0 %v32
    %109 = vmatprep.subr.mxu0 %v35
    %110 = vmatpush1.msra.mxu0 %v34
    %111 = vmatprep.subr.mxu0 %v37
    %112 = vmatpush1.msra.mxu0 %v36
    %113 = vmatprep.subr.mxu0 %v39
    %114 = vmatpush1.msra.mxu0 %v38
    %115 = vmatprep.subr.mxu0 %v41
    %116 = vmatpush1.msra.mxu0 %v40
    %117 = vmatprep.subr.mxu0 %v43
    %118 = vmatpush1.msra.mxu0 %v42
    %119 = vmatprep.subr.mxu0 %v45
    %120 = vmatpush1.msra.mxu0 %v44
    %121 = vmatprep.subr.mxu0 %v47
    %122 = vmatpush1.msra.mxu0 %v46
    %123 = vmatprep.subr.mxu0 %v49
    %124 = vmatpush1.msra.mxu0 %v48
    %125 = vmatprep.subr.mxu0 %v51
    %126 = vmatpush1.msra.mxu0 %v50
    %127 = vmatprep.subr.mxu0 %v53
    %128 = vmatpush1.msra.mxu0 %v52
    %129 = vmatprep.subr.mxu0 %v55
    %130 = vmatpush1.msra.mxu0 %v54
    %131 = vmatprep.subr.mxu0 %v57
    %132 = vmatpush1.msra.mxu0 %v56
    %133 = vmatprep.subr.mxu0 %v59
    %134 = vmatpush1.msra.mxu0 %v58
    %135 = vmatprep.subr.mxu0 %v61
    %136 = vmatpush1.msra.mxu0 %v60
    %137 = vmatprep.subr.mxu0 %v63
    %138 = vmatpush1.msra.mxu0 %v62
    %139 = vmatprep.subr.mxu0 %v65
    %140 = vmatpush1.msra.mxu0 %v64
    %141 = vmatprep.subr.mxu0 %v67
    %142 = vmatpush1.msra.mxu0 %v66
    %143 = vmatprep.subr.mxu0 %v69
    %144 = vmatpush1.msra.mxu0 %v68
    %145 = vmatprep.subr.mxu0 %v71
    %146 = vmatpush1.msra.mxu0 %v70
    %147 = vmatprep.subr.mxu0 %v73
    %148 = vmatpush1.msra.mxu0 %v72
    %149 = vmatprep.subr.mxu0 %v75
    %150 = vmatpush1.msra.mxu0 %v74
    %151 = vmatprep.subr.mxu0 %v77
    %152 = vmatpush1.msra.mxu0 %v76
    %153 = vmatprep.subr.mxu0 %v79
    %154 = vmatpush1.msra.mxu0 %v78
    %155 = vmatprep.subr.mxu0 %v81
    %156 = vmatpush1.msra.mxu0 %v80
    %157 = vmatprep.subr.mxu0 %v83
    %158 = vmatpush1.msra.mxu0 %v82
    %159 = vmatprep.subr.mxu0 %v85
    %160 = vmatpush1.msra.mxu0 %v84
    %161 = vmatprep.subr.mxu0 %v87
    %162 = vmatpush1.msra.mxu0 %v86
    %163 = vmatprep.subr.mxu0 %v89
    %164 = vmatpush1.msra.mxu0 %v88
    %165 = vmatprep.mubr.f32.mxu0 %v98
    %166 = vmatmul.mubr.f32.gmra.mrb[0].mxu0 %v94
    %v167 = vpop.f32.mrb[0].mxu0
    %v168 = vadd.f32 0.0, %v167
    %v169 = vpop.f32.mrb[0].mxu0
    %v170 = vadd.f32 0.0, %v169
    %171 = vdwg.mxu0
    %v174 = vcombine.low %v168, %v170
    %v176 = vunpack.c.l.s4 1966171168
    %v177 = vunpack.c.0.s8 %v176
    %v178 = vlaneseq
    %v179 = vshrl.u32 %v178, 7
    %v180 = vsub.s32 %v177, %v179
    %v181 = vrot.slane %v174, %v180
    %v183 = vunpack.c.l.s4 1966171168
    %v184 = vunpack.c.0.s8 %v183
    %v185 = vlaneseq
    %v186 = vshrl.u32 %v185, 7
    %v187 = vsub.s32 %v184, %v186
    %v188 = vrot.slane %v181, %v187
    %v190 = vlaneseq
    %vm191 = vcmp.ge.s32.totalorder %v190, 0
    %vm192 = vcmp.lt.s32.totalorder %v190, 256
    %vm193 = vmand %vm191, %vm192
    %194 = vst.msk [vmem:[%s2] sm:$0x3] %vm193, %v188
    // Predicated region
    $region14: #{model_forward.1} parent=1 // pred_check
      _
    $region15: #{model_forward.1} parent=1 // pred_check_branch
      %196 = sbr.rel (0) target = $region17
    $region16: #{model_forward.1} parent=1 // pred_region
      _
    $region17: #{model_forward.1} parent=1 // pred_fallthru
      _
    // Predicated region
    $region18: #{model_forward.1} parent=1 // pred_check
      _
    $region19: #{model_forward.1} parent=1 // pred_check_branch
      %198 = sbr.rel (0) target = $region21
    $region20: #{model_forward.1} parent=1 // pred_region
      _
    $region21: #{model_forward.1} parent=1 // pred_fallthru
      _
    %199 = vsyncpa [#allocation3], 1

</llo_original>
